<compile_context>
chip_gen: v7x
topology: tpu7x:2x2x1
jax: 0.10.0
libtpu: 0.0.40
codegen_flags: <defaults>
</compile_context>

<pallas_src>
import jax
import jax.numpy as jnp
from jax import lax
from jax.experimental import pallas as pl
from jax.experimental.pallas import tpu as pltpu


def _round_up(x, m):
    return ((x + m - 1) // m) * m


def _linear_kernel(x_ref, w_ref, b_ref, o_ref, acc_ref):
    # x_ref: (tm, tk)   w_ref: (tn, tk)   b_ref: (1, tn)
    # o_ref: (tm, tn)   acc_ref: (tm, tn) f32 scratch (resident across K)
    k = pl.program_id(2)

    @pl.when(k == 0)
    def _():
        acc_ref[...] = jnp.zeros_like(acc_ref)

    # (tm, tk) @ (tn, tk)^T -> (tm, tn); contraction on dim 1 of both operands
    # (no wrapper-side transpose of the weight needed).
    acc_ref[...] += lax.dot_general(
        x_ref[...], w_ref[...],
        dimension_numbers=(((1,), (1,)), ((), ())),
        preferred_element_type=jnp.float32,
    )

    @pl.when(k == pl.num_programs(2) - 1)
    def _():
        o_ref[...] = (acc_ref[...] + b_ref[...]).astype(o_ref.dtype)


def linear_forward(x, weight, bias):
    """x: (B, ...) -> flattened to (B, F); weight: (O, F) torch layout; bias: (O,)."""
    B = x.shape[0]
    F = 1
    for s in x.shape[1:]:
        F *= s
    O = weight.shape[0]

    x2d = x.reshape(B, F)  # glue: torch .view(-1, num_flat_features)

    # Tile sizes: sublane/lane aligned, sized well under VMEM budgets on all
    # generations (double-buffered inputs + f32 accumulator << 24 MiB on v7x).
    tm = min(256, _round_up(B, 8))
    tn = min(256, _round_up(O, 128))
    tk = min(512, _round_up(F, 128))

    # Pad to full tiles. Zero-padding K contributes 0 to the dot; padded M rows
    # and N lanes are sliced off below.
    M_pad = _round_up(B, tm)
    N_pad = _round_up(O, tn)
    K_pad = _round_up(F, tk)

    x_p = jnp.pad(x2d, ((0, M_pad - B), (0, K_pad - F)))
    w_p = jnp.pad(weight, ((0, N_pad - O), (0, K_pad - F)))
    b_p = jnp.pad(bias, (0, N_pad - O)).reshape(1, N_pad)

    grid = (M_pad // tm, N_pad // tn, K_pad // tk)

    bytes_el = jnp.dtype(x.dtype).itemsize
    cost = pl.CostEstimate(
        flops=2 * M_pad * N_pad * K_pad,
        transcendentals=0,
        bytes_accessed=(M_pad * K_pad + N_pad * K_pad + M_pad * N_pad) * bytes_el
        + N_pad * 4,
    )

    out_padded = pl.pallas_call(
        _linear_kernel,
        out_shape=jax.ShapeDtypeStruct((M_pad, N_pad), x.dtype),
        grid_spec=pltpu.PrefetchScalarGridSpec(
            num_scalar_prefetch=0,
            grid=grid,
            in_specs=[
                pl.BlockSpec((tm, tk), lambda i, j, k: (i, k)),   # x tile
                pl.BlockSpec((tn, tk), lambda i, j, k: (j, k)),   # weight tile (O,F layout)
                pl.BlockSpec((1, tn), lambda i, j, k: (0, j)),    # bias, resident across K
            ],
            out_specs=pl.BlockSpec((tm, tn), lambda i, j, k: (i, j)),
            scratch_shapes=[pltpu.VMEM((tm, tn), jnp.float32)],
        ),
        compiler_params=pltpu.CompilerParams(
            dimension_semantics=("parallel", "parallel", "arbitrary"),
            vmem_limit_bytes=64 * 1024 * 1024,
        ),
        cost_estimate=cost,
    )(x_p, w_p, b_p)

    return out_padded[:B, :O]


if __name__ == "__main__":
    key = jax.random.PRNGKey(0)
    kx, kw, kb = jax.random.split(key, 3)

    # Small shapes consistent with the module: x (B=2, C=4, H=16, W=16) -> F=1024
    B, C, H, W = 2, 4, 16, 16
    input_dim = C * H * W          # 1024
    output_dim = 64

    x = jax.random.normal(kx, (B, C, H, W), dtype=jnp.float32)

    # Deterministic nn.Linear-style init: U(-1/sqrt(in), 1/sqrt(in))
    bound = 1.0 / (input_dim ** 0.5)
    weight = jax.random.uniform(kw, (output_dim, input_dim),
                                minval=-bound, maxval=bound, dtype=jnp.float32)
    bias = jax.random.uniform(kb, (output_dim,),
                              minval=-bound, maxval=bound, dtype=jnp.float32)

    out = linear_forward(x, weight, bias)
    jax.block_until_ready(out)

    # sanity check against plain JAX reference
    ref = x.reshape(B, -1) @ weight.T + bias
    assert out.shape == (B, output_dim)
    assert jnp.allclose(out, ref, atol=1e-5, rtol=1e-5)

    print("KERNEL_OK")
</pallas_src>

<mosaic_0001>
module attributes {stable_mosaic.version = 11 : i64} {
  func.func @_linear_kernel(%arg0: i32, %arg1: i32, %arg2: i32, %arg3: memref<8x512xf32, #tpu.memory_space<vmem>>, %arg4: memref<128x512xf32, #tpu.memory_space<vmem>>, %arg5: memref<1x128xf32, #tpu.memory_space<vmem>>, %arg6: memref<8x128xf32, #tpu.memory_space<vmem>>, %arg7: memref<8x128xf32, #tpu.memory_space<vmem>>) attributes {dimension_semantics = [#tpu.dimension_semantics<parallel>, #tpu.dimension_semantics<parallel>, #tpu.dimension_semantics<arbitrary>], iteration_bounds = array<i64: 1, 1, 2>, scalar_prefetch = 0 : i64, scratch_operands = 1 : i64, tpu.core_type = #tpu.core_type<tc>, window_params = [{transform_indices = @transform_0, window_bounds = array<i64: 8, 512>}, {transform_indices = @transform_1, window_bounds = array<i64: 128, 512>}, {transform_indices = @transform_2, window_bounds = array<i64: 1, 128>}, {transform_indices = @transform_3, window_bounds = array<i64: 8, 128>}]} {
    %c0_i32 = arith.constant 0 : i32
    %0 = arith.cmpi eq, %arg2, %c0_i32 : i32
    %1 = arith.extui %0 : i1 to i32
    %c0_i32_0 = arith.constant 0 : i32
    %2 = arith.cmpi ne, %1, %c0_i32_0 : i32
    scf.if %2 {
      %cst_9 = arith.constant 0.000000e+00 : f32
      %12 = vector.broadcast %cst_9 : f32 to vector<8x128xf32>
      %c0_10 = arith.constant 0 : index
      %c0_11 = arith.constant 0 : index
      %13 = vector.load %arg7[%c0_10, %c0_11] : memref<8x128xf32, #tpu.memory_space<vmem>>, vector<8x128xf32>
      tpu.vector_store %arg7[%c0_10, %c0_11], %12 {strides = array<i32>} : memref<8x128xf32, #tpu.memory_space<vmem>>, vector<8x128xf32>,
    } else {
    }
    %c0 = arith.constant 0 : index
    %c0_1 = arith.constant 0 : index
    %3 = vector.load %arg7[%c0, %c0_1] : memref<8x128xf32, #tpu.memory_space<vmem>>, vector<8x128xf32>
    %c0_2 = arith.constant 0 : index
    %c0_3 = arith.constant 0 : index
    %4 = vector.load %arg3[%c0_2, %c0_3] : memref<8x512xf32, #tpu.memory_space<vmem>>, vector<8x512xf32>
    %c0_4 = arith.constant 0 : index
    %c0_5 = arith.constant 0 : index
    %5 = vector.load %arg4[%c0_4, %c0_5] : memref<128x512xf32, #tpu.memory_space<vmem>>, vector<128x512xf32>
    %cst = arith.constant dense<0.000000e+00> : vector<8x128xf32>
    %6 = tpu.matmul %4, %5, %cst {dimension_numbers = #tpu.dot_dimension_numbers<[1], [1], [0], [0], [0, 0, 1, 0], [], []>} : vector<8x512xf32>, vector<128x512xf32>, vector<8x128xf32> -> vector<8x128xf32>
    %7 = arith.addf %3, %6 : vector<8x128xf32>
    %c0_6 = arith.constant 0 : index
    %c0_7 = arith.constant 0 : index
    %8 = vector.load %arg7[%c0_6, %c0_7] : memref<8x128xf32, #tpu.memory_space<vmem>>, vector<8x128xf32>
    tpu.vector_store %arg7[%c0_6, %c0_7], %7 {strides = array<i32>} : memref<8x128xf32, #tpu.memory_space<vmem>>, vector<8x128xf32>,
    %c1_i32 = arith.constant 1 : i32
    %9 = arith.cmpi eq, %arg2, %c1_i32 : i32
    %10 = arith.extui %9 : i1 to i32
    %c0_i32_8 = arith.constant 0 : i32
    %11 = arith.cmpi ne, %10, %c0_i32_8 : i32
    scf.if %11 {
      %c0_9 = arith.constant 0 : index
      %c0_10 = arith.constant 0 : index
      %12 = vector.load %arg7[%c0_9, %c0_10] : memref<8x128xf32, #tpu.memory_space<vmem>>, vector<8x128xf32>
      %c0_11 = arith.constant 0 : index
      %c0_12 = arith.constant 0 : index
      %13 = vector.load %arg5[%c0_11, %c0_12] : memref<1x128xf32, #tpu.memory_space<vmem>>, vector<1x128xf32>
      %14 = vector.broadcast %13 : vector<1x128xf32> to vector<8x128xf32>
      %15 = arith.addf %12, %14 : vector<8x128xf32>
      %c0_13 = arith.constant 0 : index
      %c0_14 = arith.constant 0 : index
      %16 = vector.load %arg6[%c0_13, %c0_14] : memref<8x128xf32, #tpu.memory_space<vmem>>, vector<8x128xf32>
      tpu.vector_store %arg6[%c0_13, %c0_14], %15 {strides = array<i32>} : memref<8x128xf32, #tpu.memory_space<vmem>>, vector<8x128xf32>,
    } else {
    }
    return
  }
  func.func @transform_0(%arg0: i32, %arg1: i32, %arg2: i32) -> (i32, i32) {
    %c0_i32 = arith.constant 0 : i32
    return %arg0, %arg2 : i32, i32
  }
  func.func @transform_1(%arg0: i32, %arg1: i32, %arg2: i32) -> (i32, i32) {
    %c0_i32 = arith.constant 0 : i32
    return %arg1, %arg2 : i32, i32
  }
  func.func @transform_2(%arg0: i32, %arg1: i32, %arg2: i32) -> (i32, i32) {
    %c0_i32 = arith.constant 0 : i32
    %c0_i32_0 = arith.constant 0 : i32
    return %c0_i32, %arg1 : i32, i32
  }
  func.func @transform_3(%arg0: i32, %arg1: i32, %arg2: i32) -> (i32, i32) {
    %c0_i32 = arith.constant 0 : i32
    return %arg0, %arg1 : i32, i32
  }
}

</mosaic_0001>

<llo_original>
// kernel: tpu_custom_call.1
$region0: #{tpu_custom_call.1}
  #allocation0 [shape = 'u32[]', space=smem, size = 0x4, offset = 0x4, fixed_abs, tag = 'smem constant byte address 0x4 - core index']
  #allocation1 [shape = 'u32[144,128]{1,0:T(1,128)}', space=vmem, size = 0x12000, scoped, tag = 'internal scratch']
  #allocation2 [shape = 'f32[8,128]{1,0:T(8,128)}', space=vmem, size = 0x1000, scoped, tag = 'scratch operand']
  %s0 = inlined_call_operand.hbm [shape: f32[8,1024], index: 0, kind: input, shape index: {}]
  %s1 = inlined_call_operand.hbm [shape: f32[128,1024], index: 1, kind: input, shape index: {}]
  %s2 = inlined_call_operand.hbm [shape: f32[1,128], index: 2, kind: input, shape index: {}]
  %s3 = inlined_call_operand.hbm [shape: f32[8,128], index: 3, kind: output, shape index: {}]
  %s4 = sld [smem:[#allocation0]]
  $region65: #{tpu_custom_call.1} parent=0
    _
  %s6 = ssub.s32 1, %s4
  %s7 = scalar_select 0, %s6, %s4
  $region1: #{tpu_custom_call.1} parent=0
    #allocation3 [shape = 'u8[32768]{0}', space=vmem, size = 0x8000, scoped, tag = 'input window, operand 0']
    #allocation4 [shape = 's32[2]{0}', space=sflag, size = 0x8, scoped, tag = 'scoped memory for tpu_custom_call.1']
    #allocation5 [shape = 's32[2]{0}', space=sflag, size = 0x8, scoped, tag = 'scoped memory for tpu_custom_call.1']
    #allocation6 [shape = 'u8[524288]{0}', space=vmem, size = 0x80000, scoped, tag = 'input window, operand 1']
    #allocation7 [shape = 's32[2]{0}', space=sflag, size = 0x8, scoped, tag = 'scoped memory for tpu_custom_call.1']
    #allocation8 [shape = 'u8[512]{0}', space=vmem, size = 0x400, scoped, tag = 'input window, operand 2, single buffered']
    #allocation9 [shape = 'u8[4096]{0}', space=vmem, size = 0x1000, scoped, tag = 'output window, operand 0, single buffered']
    %8 = vsyncpa [#allocation4], 0
    %s9 = scalar_lea.sflag [#allocation4], 1
    %10 = vsyncpa %s9, 0
    %11 = vsyncpa [#allocation7], 0
    %s12 = scalar_lea.sflag [#allocation7], 1
    %13 = vsyncpa %s12, 0
    %14 = vsyncpa [#allocation5], 0
    loop: start=0, step=1, limit=4
    $region2: #{tpu_custom_call.1} parent=1 // loop_pre_header
      _
    $region3: #{tpu_custom_call.1} parent=1 // loop_header
      %s16 = sphi 0, %s20
      %p17 = scmp.ge.s32.totalorder %s16, 4
      %s23 = sphi 0, %s42
      %s24 = sphi 0, %s38
      %s25 = sphi 0, %s34
      %s26 = sphi 0, %s23
      %s27 = sphi 0, %s24
      %s28 = sphi 0, %s25
      %s29 = sphi 0, %s26
      %s30 = sphi 0, %s27
      %s31 = sphi 0, %s28
      %s47 = sphi 0, %s49
      %s50 = sphi 0, %s47
      %s51 = sphi 0, %s50
      %s67 = sphi 0, %s51
      %s75 = sphi 0, %s77
      %s78 = sphi 0, %s75
      %s79 = sphi 0, %s78
      %s95 = sphi 0, %s79
      %s101 = sphi 0, %s103
      %s104 = sphi 0, %s101
      %s105 = sphi 0, %s104
      %s121 = sphi 0, %s105
      %s129 = sphi 0, %s131
      %s132 = sphi 0, %s129
      %s133 = sphi 0, %s132
      %s149 = sphi 0, %s133
    $region4: #{tpu_custom_call.1} parent=1 // loop_header_branch
      %19 = sbr.rel (%p17) target = $region8
    $region5: #{tpu_custom_call.1} parent=1 // loop_body
      %s21 = ssub.s32 %s16, 1
      %s22 = ssub.s32 %s16, 2
      %s32 = sadd.s32 1, %s25
      %p33 = scmp.ge.s32.totalorder %s32, 2
      %s34 = scalar_select %p33, 0, %s32
      %s35 = sadd.s32 1, %s24
      %s36 = scalar_select %p33, %s35, %s24
      %p37 = scmp.ge.s32.totalorder %s36, 1
      %s38 = scalar_select %p37, 0, %s36
      %s39 = sadd.s32 1, %s23
      %s40 = scalar_select %p37, %s39, %s23
      %p41 = scmp.ge.s32.totalorder %s40, 1
      %s42 = scalar_select %p41, 0, %s40
      %s43 = ssub.s32 %s23, %s42
      %s44 = ssub.s32 %s25, %s34
      %s45 = sor.u32 %s43, %s44
      %p46 = scmp.eq.s32.totalorder %s45, 0
      %s48 = sadd.s32 %s47, 1
      %s49 = scalar_select %p46, %s47, %s48
      %p52 = pneg %p46
      %p53 = scmp.eq.s32.totalorder %s16, 1
      %p54 = por %p52, %p53
      %p55 = scmp.ne.s32.totalorder %s47, %s50
      %p56 = scmp.eq.s32.totalorder %s16, 0
      %p57 = por %p55, %p56
      %p58 = scmp.ne.s32.totalorder %s47, %s50
      %p59 = scmp.eq.s32.totalorder %s21, 1
      %p60 = por %p58, %p59
      %p61 = scmp.ne.s32.totalorder %s50, %s51
      %p62 = scmp.eq.s32.totalorder %s21, 0
      %p63 = por %p61, %p62
      %p64 = scmp.ne.s32.totalorder %s50, %s51
      %p65 = scmp.eq.s32.totalorder %s22, 1
      %p66 = por %p64, %p65
      %p68 = scmp.ne.s32.totalorder %s51, %s67
      %p69 = scmp.eq.s32.totalorder %s22, 0
      %p70 = por %p68, %p69
      %s71 = ssub.s32 %s24, %s38
      %s72 = ssub.s32 %s25, %s34
      %s73 = sor.u32 %s71, %s72
      %p74 = scmp.eq.s32.totalorder %s73, 0
      %s76 = sadd.s32 %s75, 1
      %s77 = scalar_select %p74, %s75, %s76
      %p80 = pneg %p74
      %p81 = scmp.eq.s32.totalorder %s16, 1
      %p82 = por %p80, %p81
      %p83 = scmp.ne.s32.totalorder %s75, %s78
      %p84 = scmp.eq.s32.totalorder %s16, 0
      %p85 = por %p83, %p84
      %p86 = scmp.ne.s32.totalorder %s75, %s78
      %p87 = scmp.eq.s32.totalorder %s21, 1
      %p88 = por %p86, %p87
      %p89 = scmp.ne.s32.totalorder %s78, %s79
      %p90 = scmp.eq.s32.totalorder %s21, 0
      %p91 = por %p89, %p90
      %p92 = scmp.ne.s32.totalorder %s78, %s79
      %p93 = scmp.eq.s32.totalorder %s22, 1
      %p94 = por %p92, %p93
      %p96 = scmp.ne.s32.totalorder %s79, %s95
      %p97 = scmp.eq.s32.totalorder %s22, 0
      %p98 = por %p96, %p97
      %s99 = ssub.s32 %s24, %s38
      %p100 = scmp.eq.s32.totalorder %s99, 0
      %s102 = sadd.s32 %s101, 1
      %s103 = scalar_select %p100, %s101, %s102
      %p106 = pneg %p100
      %p107 = scmp.eq.s32.totalorder %s16, 1
      %p108 = por %p106, %p107
      %p109 = scmp.ne.s32.totalorder %s101, %s104
      %p110 = scmp.eq.s32.totalorder %s16, 0
      %p111 = por %p109, %p110
      %p112 = scmp.ne.s32.totalorder %s101, %s104
      %p113 = scmp.eq.s32.totalorder %s21, 1
      %p114 = por %p112, %p113
      %p115 = scmp.ne.s32.totalorder %s104, %s105
      %p116 = scmp.eq.s32.totalorder %s21, 0
      %p117 = por %p115, %p116
      %p118 = scmp.ne.s32.totalorder %s104, %s105
      %p119 = scmp.eq.s32.totalorder %s22, 1
      %p120 = por %p118, %p119
      %p122 = scmp.ne.s32.totalorder %s105, %s121
      %p123 = scmp.eq.s32.totalorder %s22, 0
      %p124 = por %p122, %p123
      %s125 = ssub.s32 %s23, %s42
      %s126 = ssub.s32 %s24, %s38
      %s127 = sor.u32 %s125, %s126
      %p128 = scmp.eq.s32.totalorder %s127, 0
      %s130 = sadd.s32 %s129, 1
      %s131 = scalar_select %p128, %s129, %s130
      %p134 = pneg %p128
      %p135 = scmp.eq.s32.totalorder %s16, 1
      %p136 = por %p134, %p135
      %p137 = scmp.ne.s32.totalorder %s129, %s132
      %p138 = scmp.eq.s32.totalorder %s16, 0
      %p139 = por %p137, %p138
      %p140 = scmp.ne.s32.totalorder %s129, %s132
      %p141 = scmp.eq.s32.totalorder %s21, 1
      %p142 = por %p140, %p141
      %p143 = scmp.ne.s32.totalorder %s132, %s133
      %p144 = scmp.eq.s32.totalorder %s21, 0
      %p145 = por %p143, %p144
      %p146 = scmp.ne.s32.totalorder %s132, %s133
      %p147 = scmp.eq.s32.totalorder %s22, 1
      %p148 = por %p146, %p147
      %p150 = scmp.ne.s32.totalorder %s133, %s149
      %p151 = scmp.eq.s32.totalorder %s22, 0
      %p152 = por %p150, %p151
      %p153 = scmp.le.s32.totalorder 1, %s16
      %p154 = scmp.lt.s32.totalorder %s16, 3
      %p155 = pnand %p153, %p154
      %p156 = pneg %p155
      // Predicated region
      $region9: #{tpu_custom_call.1} parent=5 // pred_check
        _
      $region10: #{tpu_custom_call.1} parent=5 // pred_check_branch
        %158 = sbr.rel (%p155) target = $region12
      $region11: #{tpu_custom_call.1} parent=5 // pred_region
        %s159 = ssub.s32 %s16, 1
        // Predicated region
        $region13: #{tpu_custom_call.1} parent=11 // pred_check
          %p160 = pneg %p117
        $region14: #{tpu_custom_call.1} parent=11 // pred_check_branch
          %162 = sbr.rel (%p160) target = $region16
        $region15: #{tpu_custom_call.1} parent=11 // pred_region
          %s164 = ssub.s32 16, 16
          %165 = vsyncadd [#allocation7], %s164
          %s166 = smul.addr %s27, 16
          %s167 = scalar_lea.hbm %s2, %s166
          %s169 = sshll.u32 [#allocation8], 4
          %s170 = int_to_ptr.vmem [resolvable:$true] %s169
          %172 = dma.hbm_to_vmem [thread:$0]  %s167, 16, %s170, [#allocation7]
        $region16: #{tpu_custom_call.1} parent=11 // pred_fallthru
          _
      $region12: #{tpu_custom_call.1} parent=5 // pred_fallthru
        _
      %p173 = scmp.lt.s32.totalorder %s16, 2
      // Predicated region
      $region17: #{tpu_custom_call.1} parent=5 // pred_check
        %p174 = pneg %p173
      $region18: #{tpu_custom_call.1} parent=5 // pred_check_branch
        %176 = sbr.rel (%p174) target = $region20
      $region19: #{tpu_custom_call.1} parent=5 // pred_region
        // Predicated region
        $region21: #{tpu_custom_call.1} parent=19 // pred_check
          %p177 = pneg %p57
        $region22: #{tpu_custom_call.1} parent=19 // pred_check_branch
          %179 = sbr.rel (%p177) target = $region24
        $region23: #{tpu_custom_call.1} parent=19 // pred_region
          %s180 = sand.u32 %s47, 1
          %s181 = scalar_lea.sflag [#allocation4], %s180
          %s182 = sand.u32 %s47, 1
          %s183 = smul.addr %s182, 32
          %s184 = scalar_lea.vmem [#allocation3], %s183
          %s185 = smul.u32 4, %s25
          %s187 = ssub.s32 512, 512
          %188 = vsyncadd %s181, %s187
          %s189 = smul.addr %s23, 8
          %s190 = sadd.s32 %s185, %s189
          %s191 = smul.addr %s190, 128
          %s192 = scalar_lea.hbm %s0, %s191
          %s194 = sshll.u32 %s184, 4
          %s195 = int_to_ptr.vmem [resolvable:$true] %s194
          %197 = dma.hbm_to_vmem [thread:$0]  %s192, 512, %s195, %s181
        $region24: #{tpu_custom_call.1} parent=19 // pred_fallthru
          _
        // Predicated region
        $region25: #{tpu_custom_call.1} parent=19 // pred_check
          %p198 = pneg %p85
        $region26: #{tpu_custom_call.1} parent=19 // pred_check_branch
          %200 = sbr.rel (%p198) target = $region28
        $region27: #{tpu_custom_call.1} parent=19 // pred_region
          %s201 = sand.u32 %s16, 1
          %s202 = scalar_lea.sflag [#allocation7], %s201
          %s203 = sand.u32 %s75, 1
          %s204 = smul.addr %s203, 512
          %s205 = scalar_lea.vmem [#allocation6], %s204
          %s206 = smul.u32 16, %s24
          %s207 = smul.u32 4, %s25
          %s209 = ssub.s32 8192, 8192
          %210 = vsyncadd %s202, %s209
          %s211 = smul.addr %s206, 8
          %s212 = sadd.s32 %s207, %s211
          %s213 = smul.addr %s212, 128
          %s214 = scalar_lea.hbm %s1, %s213
          %s215 = sshll.u32 %s205, 4
          %s216 = int_to_ptr.vmem [resolvable:$true] %s215
          %221 = dma.hbm_to_vmem [thread:$0]  %s214, 8192, %s216, %s202, 1024, 512, 32
        $region28: #{tpu_custom_call.1} parent=19 // pred_fallthru
          _
      $region20: #{tpu_custom_call.1} parent=5 // pred_fallthru
        _
      %p222 = scmp.le.s32.totalorder 1, %s16
      %p223 = scmp.lt.s32.totalorder %s16, 3
      %p224 = pnand %p222, %p223
      %p225 = pneg %p224
      // Predicated region
      $region29: #{tpu_custom_call.1} parent=5 // pred_check
        _
      $region30: #{tpu_custom_call.1} parent=5 // pred_check_branch
        %227 = sbr.rel (%p224) target = $region32
      $region31: #{tpu_custom_call.1} parent=5 // pred_region
        %s228 = ssub.s32 %s16, 1
        %s229 = sand.u32 %s50, 1
        %s230 = scalar_lea.sflag [#allocation4], %s229
        %s231 = sand.u32 %s50, 1
        %s232 = smul.addr %s231, 32
        %s233 = scalar_lea.vmem [#allocation3], %s232
        // Predicated region
        $region33: #{tpu_custom_call.1} parent=31 // pred_check
          %p234 = pneg %p63
        $region34: #{tpu_custom_call.1} parent=31 // pred_check_branch
          %236 = sbr.rel (%p234) target = $region36
        $region35: #{tpu_custom_call.1} parent=31 // pred_region
          %237 = dma.done %s230, 512
        $region36: #{tpu_custom_call.1} parent=31 // pred_fallthru
          _
        %s238 = sand.u32 %s21, 1
        %s239 = scalar_lea.sflag [#allocation7], %s238
        %s240 = sand.u32 %s78, 1
        %s241 = smul.addr %s240, 512
        %s242 = scalar_lea.vmem [#allocation6], %s241
        // Predicated region
        $region37: #{tpu_custom_call.1} parent=31 // pred_check
          %p243 = pneg %p91
        $region38: #{tpu_custom_call.1} parent=31 // pred_check_branch
          %245 = sbr.rel (%p243) target = $region40
        $region39: #{tpu_custom_call.1} parent=31 // pred_region
          %246 = dma.done %s239, 8192
        $region40: #{tpu_custom_call.1} parent=31 // pred_fallthru
          _
        // Predicated region
        $region41: #{tpu_custom_call.1} parent=31 // pred_check
          %p247 = pneg %p117
        $region42: #{tpu_custom_call.1} parent=31 // pred_check_branch
          %249 = sbr.rel (%p247) target = $region44
        $region43: #{tpu_custom_call.1} parent=31 // pred_region
          %250 = dma.done [#allocation7], 16
        $region44: #{tpu_custom_call.1} parent=31 // pred_fallthru
          _
        %s251 = sand.u32 %s50, 1
        %s252 = scalar_lea.sflag [#allocation4], %s251
        %s253 = sand.u32 %s50, 1
        %s254 = smul.addr %s253, 32
        %s255 = scalar_lea.vmem [#allocation3], %s254
        %p256 = pneg %p63
        %p257 = pneg %p60
        %s258 = sand.u32 %s21, 1
        %s259 = scalar_lea.sflag [#allocation7], %s258
        %s260 = sand.u32 %s78, 1
        %s261 = smul.addr %s260, 512
        %s262 = scalar_lea.vmem [#allocation6], %s261
        %p263 = pneg %p91
        %p264 = pneg %p88
        %p265 = pneg %p117
        %p266 = pneg %p114
        %p267 = pneg %p145
        %p268 = pneg %p142
        %s269 = smul.u32 4, %s28
        %s270 = smul.u32 16, %s27
        %s271 = smul.u32 4, %s28
        %p272 = scmp.eq.s32.totalorder %s28, 0
        // Predicated region
        $region45: #{tpu_custom_call.1} parent=31 // pred_check
          %p273 = pneg %p272
        $region46: #{tpu_custom_call.1} parent=31 // pred_check_branch
          %275 = sbr.rel (%p273) target = $region48
        $region47: #{tpu_custom_call.1} parent=31 // pred_region
          %276 = vst [vmem:[#allocation2] sm:$0xff] 0.0
        $region48: #{tpu_custom_call.1} parent=31 // pred_fallthru
          _
        %v277 = vld [vmem:[#allocation2] sm:$0xff]
        %v278 = vld [vmem:[%s233] sm:$0xff]
        %v279 = vld [vmem:[%s233 + $0x8] sm:$0xff]
        %v280 = vld [vmem:[%s233 + $0x10] sm:$0xff]
        %v281 = vld [vmem:[%s233 + $0x18] sm:$0xff]
        %v282 = vld [vmem:[%s242] sm:$0xff]
        %v283 = vld [vmem:[%s242 + $0x8] sm:$0xff]
        %v284 = vld [vmem:[%s242 + $0x10] sm:$0xff]
        %v285 = vld [vmem:[%s242 + $0x18] sm:$0xff]
        %v286 = vld [vmem:[%s242 + $0x20] sm:$0xff]
        %v287 = vld [vmem:[%s242 + $0x28] sm:$0xff]
        %v288 = vld [vmem:[%s242 + $0x30] sm:$0xff]
        %v289 = vld [vmem:[%s242 + $0x38] sm:$0xff]
        %v290 = vld [vmem:[%s242 + $0x40] sm:$0xff]
        %v291 = vld [vmem:[%s242 + $0x48] sm:$0xff]
        %v292 = vld [vmem:[%s242 + $0x50] sm:$0xff]
        %v293 = vld [vmem:[%s242 + $0x58] sm:$0xff]
        %v294 = vld [vmem:[%s242 + $0x60] sm:$0xff]
        %v295 = vld [vmem:[%s242 + $0x68] sm:$0xff]
        %v296 = vld [vmem:[%s242 + $0x70] sm:$0xff]
        %v297 = vld [vmem:[%s242 + $0x78] sm:$0xff]
        %v298 = vld [vmem:[%s242 + $0x80] sm:$0xff]
        %v299 = vld [vmem:[%s242 + $0x88] sm:$0xff]
        %v300 = vld [vmem:[%s242 + $0x90] sm:$0xff]
        %v301 = vld [vmem:[%s242 + $0x98] sm:$0xff]
        %v302 = vld [vmem:[%s242 + $0xa0] sm:$0xff]
        %v303 = vld [vmem:[%s242 + $0xa8] sm:$0xff]
        %v304 = vld [vmem:[%s242 + $0xb0] sm:$0xff]
        %v305 = vld [vmem:[%s242 + $0xb8] sm:$0xff]
        %v306 = vld [vmem:[%s242 + $0xc0] sm:$0xff]
        %v307 = vld [vmem:[%s242 + $0xc8] sm:$0xff]
        %v308 = vld [vmem:[%s242 + $0xd0] sm:$0xff]
        %v309 = vld [vmem:[%s242 + $0xd8] sm:$0xff]
        %v310 = vld [vmem:[%s242 + $0xe0] sm:$0xff]
        %v311 = vld [vmem:[%s242 + $0xe8] sm:$0xff]
        %v312 = vld [vmem:[%s242 + $0xf0] sm:$0xff]
        %v313 = vld [vmem:[%s242 + $0xf8] sm:$0xff]
        %v314 = vld [vmem:[%s242 + $0x100] sm:$0xff]
        %v315 = vld [vmem:[%s242 + $0x108] sm:$0xff]
        %v316 = vld [vmem:[%s242 + $0x110] sm:$0xff]
        %v317 = vld [vmem:[%s242 + $0x118] sm:$0xff]
        %v318 = vld [vmem:[%s242 + $0x120] sm:$0xff]
        %v319 = vld [vmem:[%s242 + $0x128] sm:$0xff]
        %v320 = vld [vmem:[%s242 + $0x130] sm:$0xff]
        %v321 = vld [vmem:[%s242 + $0x138] sm:$0xff]
        %v322 = vld [vmem:[%s242 + $0x140] sm:$0xff]
        %v323 = vld [vmem:[%s242 + $0x148] sm:$0xff]
        %v324 = vld [vmem:[%s242 + $0x150] sm:$0xff]
        %v325 = vld [vmem:[%s242 + $0x158] sm:$0xff]
        %v326 = vld [vmem:[%s242 + $0x160] sm:$0xff]
        %v327 = vld [vmem:[%s242 + $0x168] sm:$0xff]
        %v328 = vld [vmem:[%s242 + $0x170] sm:$0xff]
        %v329 = vld [vmem:[%s242 + $0x178] sm:$0xff]
        %v330 = vld [vmem:[%s242 + $0x180] sm:$0xff]
        %v331 = vld [vmem:[%s242 + $0x188] sm:$0xff]
        %v332 = vld [vmem:[%s242 + $0x190] sm:$0xff]
        %v333 = vld [vmem:[%s242 + $0x198] sm:$0xff]
        %v334 = vld [vmem:[%s242 + $0x1a0] sm:$0xff]
        %v335 = vld [vmem:[%s242 + $0x1a8] sm:$0xff]
        %v336 = vld [vmem:[%s242 + $0x1b0] sm:$0xff]
        %v337 = vld [vmem:[%s242 + $0x1b8] sm:$0xff]
        %v338 = vld [vmem:[%s242 + $0x1c0] sm:$0xff]
        %v339 = vld [vmem:[%s242 + $0x1c8] sm:$0xff]
        %v340 = vld [vmem:[%s242 + $0x1d0] sm:$0xff]
        %v341 = vld [vmem:[%s242 + $0x1d8] sm:$0xff]
        %v342 = vld [vmem:[%s242 + $0x1e0] sm:$0xff]
        %v343 = vld [vmem:[%s242 + $0x1e8] sm:$0xff]
        %v344 = vld [vmem:[%s242 + $0x1f0] sm:$0xff]
        %v345 = vld [vmem:[%s242 + $0x1f8] sm:$0xff]
        %346 = vmatprep.subr.mxu0 %v283
        %347 = vmatpush1.xpose.msra.mxu0 %v282
        %348 = vmatprep.subr.mxu0 %v287
        %349 = vmatpush1.xpose.msra.mxu0 %v286
        %350 = vmatprep.subr.mxu0 %v291
        %351 = vmatpush1.xpose.msra.mxu0 %v290
        %352 = vmatprep.subr.mxu0 %v295
        %353 = vmatpush1.xpose.msra.mxu0 %v294
        %354 = vmatprep.subr.mxu0 %v299
        %355 = vmatpush1.xpose.msra.mxu0 %v298
        %356 = vmatprep.subr.mxu0 %v303
        %357 = vmatpush1.xpose.msra.mxu0 %v302
        %358 = vmatprep.subr.mxu0 %v307
        %359 = vmatpush1.xpose.msra.mxu0 %v306
        %360 = vmatprep.subr.mxu0 %v311
        %361 = vmatpush1.xpose.msra.mxu0 %v310
        %362 = vmatprep.subr.mxu0 %v315
        %363 = vmatpush1.xpose.msra.mxu0 %v314
        %364 = vmatprep.subr.mxu0 %v319
        %365 = vmatpush1.xpose.msra.mxu0 %v318
        %366 = vmatprep.subr.mxu0 %v323
        %367 = vmatpush1.xpose.msra.mxu0 %v322
        %368 = vmatprep.subr.mxu0 %v327
        %369 = vmatpush1.xpose.msra.mxu0 %v326
        %370 = vmatprep.subr.mxu0 %v331
        %371 = vmatpush1.xpose.msra.mxu0 %v330
        %372 = vmatprep.subr.mxu0 %v335
        %373 = vmatpush1.xpose.msra.mxu0 %v334
        %374 = vmatprep.subr.mxu0 %v339
        %375 = vmatpush1.xpose.msra.mxu0 %v338
        %376 = vmatprep.subr.mxu0 %v343
        %377 = vmatpush1.xpose.msra.mxu0 %v342
        %378 = vmatprep.subr.mxu0 0.0
        %379 = vmatpush1.xpose.msra.mxu0 0.0
        %380 = vmatprep.subr.mxu0 0.0
        %381 = vmatpush1.xpose.msra.mxu0 0.0
        %382 = vmatprep.subr.mxu0 0.0
        %383 = vmatpush1.xpose.msra.mxu0 0.0
        %384 = vmatprep.subr.mxu0 0.0
        %385 = vmatpush1.xpose.msra.mxu0 0.0
        %386 = vmatprep.subr.mxu0 0.0
        %387 = vmatpush1.xpose.msra.mxu0 0.0
        %388 = vmatprep.subr.mxu0 0.0
        %389 = vmatpush1.xpose.msra.mxu0 0.0
        %390 = vmatprep.subr.mxu0 0.0
        %391 = vmatpush1.xpose.msra.mxu0 0.0
        %392 = vmatprep.subr.mxu0 0.0
        %393 = vmatpush1.xpose.msra.mxu0 0.0
        %394 = vmatprep.subr.mxu0 0.0
        %395 = vmatpush1.xpose.msra.mxu0 0.0
        %396 = vmatprep.subr.mxu0 0.0
        %397 = vmatpush1.xpose.msra.mxu0 0.0
        %398 = vmatprep.subr.mxu0 0.0
        %399 = vmatpush1.xpose.msra.mxu0 0.0
        %400 = vmatprep.subr.mxu0 0.0
        %401 = vmatpush1.xpose.msra.mxu0 0.0
        %402 = vmatprep.subr.mxu0 0.0
        %403 = vmatpush1.xpose.msra.mxu0 0.0
        %404 = vmatprep.subr.mxu0 0.0
        %405 = vmatpush1.xpose.msra.mxu0 0.0
        %406 = vmatprep.subr.mxu0 0.0
        %407 = vmatpush1.xpose.msra.mxu0 0.0
        %408 = vmatprep.subr.mxu0 0.0
        %409 = vmatpush1.xpose.msra.mxu0 0.0
        %410 = vmatprep.mubr.f32.mxu0 %v279
        %411 = vmatmul.mubr.f32.gmra.mrb[0].mxu0 %v278
        %v412 = vpop.f32.mrb[0].mxu0
        %v413 = vadd.f32 0.0, %v412
        %v414 = vpop.f32.mrb[0].mxu0
        %415 = vdwg.mxu0
        %416 = vmatprep.subr.mxu0 %v285
        %417 = vmatpush1.xpose.msra.mxu0 %v284
        %418 = vmatprep.subr.mxu0 %v289
        %419 = vmatpush1.xpose.msra.mxu0 %v288
        %420 = vmatprep.subr.mxu0 %v293
        %421 = vmatpush1.xpose.msra.mxu0 %v292
        %422 = vmatprep.subr.mxu0 %v297
        %423 = vmatpush1.xpose.msra.mxu0 %v296
        %424 = vmatprep.subr.mxu0 %v301
        %425 = vmatpush1.xpose.msra.mxu0 %v300
        %426 = vmatprep.subr.mxu0 %v305
        %427 = vmatpush1.xpose.msra.mxu0 %v304
        %428 = vmatprep.subr.mxu0 %v309
        %429 = vmatpush1.xpose.msra.mxu0 %v308
        %430 = vmatprep.subr.mxu0 %v313
        %431 = vmatpush1.xpose.msra.mxu0 %v312
        %432 = vmatprep.subr.mxu0 %v317
        %433 = vmatpush1.xpose.msra.mxu0 %v316
        %434 = vmatprep.subr.mxu0 %v321
        %435 = vmatpush1.xpose.msra.mxu0 %v320
        %436 = vmatprep.subr.mxu0 %v325
        %437 = vmatpush1.xpose.msra.mxu0 %v324
        %438 = vmatprep.subr.mxu0 %v329
        %439 = vmatpush1.xpose.msra.mxu0 %v328
        %440 = vmatprep.subr.mxu0 %v333
        %441 = vmatpush1.xpose.msra.mxu0 %v332
        %442 = vmatprep.subr.mxu0 %v337
        %443 = vmatpush1.xpose.msra.mxu0 %v336
        %444 = vmatprep.subr.mxu0 %v341
        %445 = vmatpush1.xpose.msra.mxu0 %v340
        %446 = vmatprep.subr.mxu0 %v345
        %447 = vmatpush1.xpose.msra.mxu0 %v344
        %448 = vmatprep.subr.mxu0 0.0
        %449 = vmatpush1.xpose.msra.mxu0 0.0
        %450 = vmatprep.subr.mxu0 0.0
        %451 = vmatpush1.xpose.msra.mxu0 0.0
        %452 = vmatprep.subr.mxu0 0.0
        %453 = vmatpush1.xpose.msra.mxu0 0.0
        %454 = vmatprep.subr.mxu0 0.0
        %455 = vmatpush1.xpose.msra.mxu0 0.0
        %456 = vmatprep.subr.mxu0 0.0
        %457 = vmatpush1.xpose.msra.mxu0 0.0
        %458 = vmatprep.subr.mxu0 0.0
        %459 = vmatpush1.xpose.msra.mxu0 0.0
        %460 = vmatprep.subr.mxu0 0.0
        %461 = vmatpush1.xpose.msra.mxu0 0.0
        %462 = vmatprep.subr.mxu0 0.0
        %463 = vmatpush1.xpose.msra.mxu0 0.0
        %464 = vmatprep.subr.mxu0 0.0
        %465 = vmatpush1.xpose.msra.mxu0 0.0
        %466 = vmatprep.subr.mxu0 0.0
        %467 = vmatpush1.xpose.msra.mxu0 0.0
        %468 = vmatprep.subr.mxu0 0.0
        %469 = vmatpush1.xpose.msra.mxu0 0.0
        %470 = vmatprep.subr.mxu0 0.0
        %471 = vmatpush1.xpose.msra.mxu0 0.0
        %472 = vmatprep.subr.mxu0 0.0
        %473 = vmatpush1.xpose.msra.mxu0 0.0
        %474 = vmatprep.subr.mxu0 0.0
        %475 = vmatpush1.xpose.msra.mxu0 0.0
        %476 = vmatprep.subr.mxu0 0.0
        %477 = vmatpush1.xpose.msra.mxu0 0.0
        %478 = vmatprep.subr.mxu0 0.0
        %479 = vmatpush1.xpose.msra.mxu0 0.0
        %480 = vmatprep.mubr.f32.mxu0 %v281
        %481 = vmatmul.mubr.f32.gmra.mrb[0].mxu0 %v280
        %v482 = vpop.f32.mrb[0].mxu0
        %v483 = vadd.f32 %v413, %v482
        %v484 = vpop.f32.mrb[0].mxu0
        %485 = vdwg.mxu0
        %v486 = vadd.f32 %v277, %v483
        %487 = vst [vmem:[#allocation2] sm:$0xff] %v486
        %p488 = scmp.eq.s32.totalorder %s28, 1
        // Predicated region
        $region49: #{tpu_custom_call.1} parent=31 // pred_check
          %p489 = pneg %p488
        $region50: #{tpu_custom_call.1} parent=31 // pred_check_branch
          %491 = sbr.rel (%p489) target = $region52
        $region51: #{tpu_custom_call.1} parent=31 // pred_region
          %v492 = vld [vmem:[#allocation2] sm:$0xff]
          %v493 = vld [vmem:[#allocation8] sm:$0x1]
          %v495 = vlaneseq
          %v496 = vshrl.u32 %v495, 7
          %v497 = vsub.s32 0, %v496
          %v498 = vrot.slane %v493, %v497
          %v500 = vadd.f32 %v492, %v498
          %501 = vst [vmem:[#allocation9] sm:$0xff] %v500
        $region52: #{tpu_custom_call.1} parent=31 // pred_fallthru
          _
        // Predicated region
        $region53: #{tpu_custom_call.1} parent=31 // pred_check
          %p502 = pneg %p142
        $region54: #{tpu_custom_call.1} parent=31 // pred_check_branch
          %504 = sbr.rel (%p502) target = $region56
        $region55: #{tpu_custom_call.1} parent=31 // pred_region
          %s506 = ssub.s32 128, 128
          %507 = vsyncadd [#allocation5], %s506
          %s508 = sadd.s32 %s27, %s26
          %s509 = smul.addr %s508, 128
          %s510 = scalar_lea.hbm %s3, %s509
          %s512 = sshll.u32 [#allocation9], 4
          %s513 = int_to_ptr.vmem [resolvable:$true] %s512
          %515 = dma.vmem_to_hbm [thread:$0]  %s513, 128, %s510, [#allocation5]
        $region56: #{tpu_custom_call.1} parent=31 // pred_fallthru
          _
        // Predicated region
        $region57: #{tpu_custom_call.1} parent=31 // pred_check
          %p516 = pneg %p142
        $region58: #{tpu_custom_call.1} parent=31 // pred_check_branch
          %518 = sbr.rel (%p516) target = $region60
        $region59: #{tpu_custom_call.1} parent=31 // pred_region
          %519 = dma.done [#allocation5], 128
        $region60: #{tpu_custom_call.1} parent=31 // pred_fallthru
          _
      $region32: #{tpu_custom_call.1} parent=5 // pred_fallthru
        _
      %p520 = scmp.le.s32.totalorder 2, %s16
      // Predicated region
      $region61: #{tpu_custom_call.1} parent=5 // pred_check
        %p521 = pneg %p520
      $region62: #{tpu_custom_call.1} parent=5 // pred_check_branch
        %523 = sbr.rel (%p521) target = $region64
      $region63: #{tpu_custom_call.1} parent=5 // pred_region
        %s524 = ssub.s32 %s16, 2
      $region64: #{tpu_custom_call.1} parent=5 // pred_fallthru
        _
    $region6: #{tpu_custom_call.1} parent=1 // loop_footer
      %s20 = sadd.s32 1, %s16
    $region7: #{tpu_custom_call.1} parent=1 // loop_footer_branch
      %15 = sbr.rel target = $region3
    $region8: #{tpu_custom_call.1} parent=1 // loop_exit
      _
    %525 = vsyncpa [#allocation4], 1
    %s526 = scalar_lea.sflag [#allocation4], 1
    %527 = vsyncpa %s526, 1
    %528 = vsyncpa [#allocation7], 1
    %s529 = scalar_lea.sflag [#allocation7], 1
    %530 = vsyncpa %s529, 1
    %531 = vsyncpa [#allocation5], 1
    %s532 = scalar_lea.sflag [#allocation5], 1
    %533 = vsyncpa %s532, 1

</llo_original>
